<compile_context>
chip_gen: v7x
topology: tpu7x:2x2x1
jax: 0.10.0
libtpu: 0.0.40
codegen_flags: <defaults>
</compile_context>

<pallas_src>
import functools

import jax
import jax.numpy as jnp
from jax import lax
from jax.experimental import pallas as pl
from jax.experimental.pallas import tpu as pltpu


def _gram_kernel(f_ref, o_ref, *, hw, tk, n_k_per_split, inv_hw):
    # f_ref: (1, C, TK)    current (split, batch, k) input block
    # o_ref: (1, 1, C, C)  f32 output block, resident across the k axis
    s = pl.program_id(0)        # reduction split (megacore B==1 path)
    k = pl.program_id(2)        # k-block within this split
    g = s * n_k_per_split + k   # global (unclamped) k-block index
    valid = hw - g * tk         # number of valid lanes in this block

    @pl.when(k == 0)
    def _init():
        o_ref[0, 0] = jnp.zeros(o_ref.shape[2:], o_ref.dtype)

    # Zero-mask the (at most one per split) partial / out-of-range tail block.
    # Full blocks skip this entirely, keeping the VPU off the critical path.
    @pl.when(valid < tk)
    def _mask_tail():
        c, tk_ = f_ref.shape[1], f_ref.shape[2]
        lane = lax.broadcasted_iota(jnp.int32, (c, tk_), 1)
        f_ref[0] = jnp.where(lane < valid, f_ref[0], 0.0)

    f = f_ref[0]  # (C, TK)
    # G_blk = F_blk @ F_blk^T on the MXU: contract last dims, no transpose.
    o_ref[0, 0] += lax.dot_general(
        f, f,
        dimension_numbers=(((1,), (1,)), ((), ())),
        precision=lax.Precision.HIGHEST,    # exact f32 parity with torch.bmm
        preferred_element_type=jnp.float32,
    )

    @pl.when(k == n_k_per_split - 1)
    def _finalize():
        o_ref[0, 0] = o_ref[0, 0] * inv_hw


def _round_up(x, m):
    return ((x + m - 1) // m) * m


def _cdiv(a, b):
    return -(-a // b)


def _tpu_generation():
    try:
        kind = jax.devices()[0].device_kind.lower()
    except Exception:
        return "unknown"
    if "v5" in kind:
        return "v5e"
    if "v6" in kind:
        return "v6e"
    if "v7" in kind or "7x" in kind:
        return "v7x"
    return "unknown"


# Per-input-buffer budget (double-buffered by the BlockSpec pipeline).
_TK_BUDGET_BYTES = {"v5e": 6 << 20, "v6e": 12 << 20, "v7x": 10 << 20,
                    "unknown": 6 << 20}
# Scoped-VMEM defaults and safe ceilings per generation.
_SCOPED_DEFAULT = {"v5e": 16 << 20, "v6e": 32 << 20, "v7x": 32 << 20,
                   "unknown": 16 << 20}
_VMEM_CEILING = {"v5e": 100 << 20, "v6e": 100 << 20, "v7x": 48 << 20,
                 "unknown": 48 << 20}


def _choose_tk(c, hw, budget_bytes, dtype_bytes=4):
    """Lane-aligned K tile: as big as the budget allows, rebalanced so the
    tail block wastes fewer than 128 lanes (no pad-to-TK blowup)."""
    hw_lanes = _round_up(hw, 128)
    tk_target = max(128, (budget_bytes // (c * dtype_bytes)) // 128 * 128)
    tk_target = min(tk_target, hw_lanes)
    n_k = _cdiv(hw_lanes, tk_target)
    return _round_up(_cdiv(hw_lanes, n_k), 128)


def gram_matrix(x, k_tile=None):
    """x: (B, C, H, W) -> (B, C, C) f32, matching torch.bmm(f, f.T) / (h*w)."""
    b, c, h, w = x.shape
    hw = h * w
    f = x.reshape(b, c, hw).astype(jnp.float32)

    gen = _tpu_generation()
    tk = int(k_tile) if k_tile is not None else _choose_tk(
        c, hw, _TK_BUDGET_BYTES[gen])
    n_k = _cdiv(hw, tk)

    # B == 1 megacore path: split the HW reduction across two "parallel"
    # slabs (each core reads half of F); partial Gram slabs summed below.
    n_split = 2 if (b == 1 and n_k >= 8) else 1
    n_k_per_split = _cdiv(n_k, n_split)

    kernel = functools.partial(
        _gram_kernel, hw=hw, tk=tk, n_k_per_split=n_k_per_split,
        inv_hw=1.0 / float(hw))

    def in_map(s, i, k):
        # Clamp: an out-of-range block (odd n_k with n_split == 2) re-reads
        # the last block and is fully zero-masked in the kernel.
        return (i, 0, jnp.minimum(s * n_k_per_split + k, n_k - 1))

    # Raise the scoped-VMEM limit only when the working set needs it
    # (double-buffered input + double-buffered resident output + headroom).
    working_set = 2 * c * tk * 4 + 2 * c * c * 4 + (2 << 20)
    vmem_limit = None
    if working_set > _SCOPED_DEFAULT[gen]:
        vmem_limit = min(_VMEM_CEILING[gen], _round_up(working_set, 1 << 20))

    out = pl.pallas_call(
        kernel,
        out_shape=jax.ShapeDtypeStruct((b, n_split, c, c), jnp.float32),
        grid_spec=pltpu.PrefetchScalarGridSpec(
            num_scalar_prefetch=0,
            grid=(n_split, b, n_k_per_split),
            in_specs=[pl.BlockSpec((1, c, tk), in_map)],
            out_specs=pl.BlockSpec((1, 1, c, c), lambda s, i, k: (i, s, 0, 0)),
        ),
        compiler_params=pltpu.CompilerParams(
            dimension_semantics=("parallel", "parallel", "arbitrary"),
            vmem_limit_bytes=vmem_limit,
        ),
    )(f)

    if n_split == 1:
        return out[:, 0]
    return out.sum(axis=1)


def _gram_ref(x):
    b, c, h, w = x.shape
    f = x.reshape(b, c, h * w).astype(jnp.float32)
    return jnp.einsum("bij,bkj->bik", f, f,
                      precision=lax.Precision.HIGHEST) / (h * w)


if __name__ == "__main__":
    key = jax.random.PRNGKey(0)
    x = jax.random.normal(key, (2, 4, 16, 16), dtype=jnp.float32)
    out = jax.block_until_ready(gram_matrix(x))
    ref = _gram_ref(x)
    assert out.shape == (2, 4, 4), out.shape
    assert jnp.allclose(out, ref, atol=1e-5, rtol=1e-5)

    # Non-128-aligned HW: exercises the in-kernel tail mask (no wrapper pad).
    x2 = jax.random.normal(jax.random.PRNGKey(1), (2, 12, 20, 20),
                           dtype=jnp.float32)
    out2 = jax.block_until_ready(gram_matrix(x2))
    assert out2.shape == (2, 12, 12), out2.shape
    assert jnp.allclose(out2, _gram_ref(x2), atol=1e-4, rtol=1e-4)

    # B == 1 with a forced small K tile: exercises the two-way reduction
    # split (odd block count -> clamped duplicate block is fully masked).
    x3 = jax.random.normal(jax.random.PRNGKey(2), (1, 8, 60, 60),
                           dtype=jnp.float32)
    out3 = jax.block_until_ready(gram_matrix(x3, k_tile=256))
    assert out3.shape == (1, 8, 8), out3.shape
    assert jnp.allclose(out3, _gram_ref(x3), atol=1e-4, rtol=1e-4)

    print("KERNEL_OK")
</pallas_src>

<mosaic_0001>
module attributes {stable_mosaic.version = 11 : i64} {
  func.func @_gram_kernel(%arg0: i32, %arg1: i32, %arg2: i32, %arg3: memref<1x4x256xf32, #tpu.memory_space<vmem>>, %arg4: memref<1x1x4x4xf32, #tpu.memory_space<vmem>>) attributes {dimension_semantics = [#tpu.dimension_semantics<parallel>, #tpu.dimension_semantics<parallel>, #tpu.dimension_semantics<arbitrary>], iteration_bounds = array<i64: 1, 2, 1>, scalar_prefetch = 0 : i64, scratch_operands = 0 : i64, tpu.core_type = #tpu.core_type<tc>, window_params = [{transform_indices = @transform_0, window_bounds = array<i64: 1, 4, 256>}, {transform_indices = @transform_1, window_bounds = array<i64: 1, 1, 4, 4>}]} {
    %c1_i32 = arith.constant 1 : i32
    %0 = arith.muli %arg0, %c1_i32 : i32
    %1 = arith.addi %0, %arg2 : i32
    %c256_i32 = arith.constant 256 : i32
    %2 = arith.muli %1, %c256_i32 : i32
    %c256_i32_0 = arith.constant 256 : i32
    %3 = arith.subi %c256_i32_0, %2 : i32
    %c0_i32 = arith.constant 0 : i32
    %4 = arith.cmpi eq, %arg2, %c0_i32 : i32
    %5 = arith.extui %4 : i1 to i32
    %c0_i32_1 = arith.constant 0 : i32
    %6 = arith.cmpi ne, %5, %c0_i32_1 : i32
    scf.if %6 {
      %cst_16 = arith.constant 0.000000e+00 : f32
      %22 = vector.broadcast %cst_16 : f32 to vector<4x4xf32>
      %c0_17 = arith.constant 0 : index
      %c0_18 = arith.constant 0 : index
      %c0_19 = arith.constant 0 : index
      %c0_20 = arith.constant 0 : index
      %23 = vector.load %arg4[%c0_17, %c0_18, %c0_19, %c0_20] : memref<1x1x4x4xf32, #tpu.memory_space<vmem>>, vector<1x1x4x4xf32>
      %24 = vector.shape_cast %23 : vector<1x1x4x4xf32> to vector<4x4xf32>
      %25 = vector.shape_cast %22 : vector<4x4xf32> to vector<1x1x4x4xf32>
      tpu.vector_store %arg4[%c0_17, %c0_18, %c0_19, %c0_20], %25 {strides = array<i32>} : memref<1x1x4x4xf32, #tpu.memory_space<vmem>>, vector<1x1x4x4xf32>,
    } else {
    }
    %c256_i32_2 = arith.constant 256 : i32
    %7 = arith.cmpi slt, %3, %c256_i32_2 : i32
    %8 = arith.extui %7 : i1 to i32
    %c0_i32_3 = arith.constant 0 : i32
    %9 = arith.cmpi ne, %8, %c0_i32_3 : i32
    scf.if %9 {
      %22 = tpu.iota {dimensions = array<i32: 1>} : vector<4x256xi32>
      %23 = vector.broadcast %3 : i32 to vector<4x256xi32>
      %24 = arith.cmpi slt, %22, %23 : vector<4x256xi32>
      %c0_16 = arith.constant 0 : index
      %c0_17 = arith.constant 0 : index
      %c0_18 = arith.constant 0 : index
      %25 = vector.load %arg3[%c0_16, %c0_17, %c0_18] : memref<1x4x256xf32, #tpu.memory_space<vmem>>, vector<1x4x256xf32>
      %26 = vector.shape_cast %25 : vector<1x4x256xf32> to vector<4x256xf32>
      %cst_19 = arith.constant 0.000000e+00 : f32
      %27 = vector.broadcast %cst_19 : f32 to vector<4x256xf32>
      %28 = arith.select %24, %26, %27 : vector<4x256xi1>, vector<4x256xf32>
      %c0_20 = arith.constant 0 : index
      %c0_21 = arith.constant 0 : index
      %c0_22 = arith.constant 0 : index
      %29 = vector.load %arg3[%c0_20, %c0_21, %c0_22] : memref<1x4x256xf32, #tpu.memory_space<vmem>>, vector<1x4x256xf32>
      %30 = vector.shape_cast %29 : vector<1x4x256xf32> to vector<4x256xf32>
      %31 = vector.shape_cast %28 : vector<4x256xf32> to vector<1x4x256xf32>
      tpu.vector_store %arg3[%c0_20, %c0_21, %c0_22], %31 {strides = array<i32>} : memref<1x4x256xf32, #tpu.memory_space<vmem>>, vector<1x4x256xf32>,
    } else {
    }
    %c0 = arith.constant 0 : index
    %c0_4 = arith.constant 0 : index
    %c0_5 = arith.constant 0 : index
    %10 = vector.load %arg3[%c0, %c0_4, %c0_5] : memref<1x4x256xf32, #tpu.memory_space<vmem>>, vector<1x4x256xf32>
    %11 = vector.shape_cast %10 : vector<1x4x256xf32> to vector<4x256xf32>
    %c0_6 = arith.constant 0 : index
    %c0_7 = arith.constant 0 : index
    %c0_8 = arith.constant 0 : index
    %c0_9 = arith.constant 0 : index
    %12 = vector.load %arg4[%c0_6, %c0_7, %c0_8, %c0_9] : memref<1x1x4x4xf32, #tpu.memory_space<vmem>>, vector<1x1x4x4xf32>
    %13 = vector.shape_cast %12 : vector<1x1x4x4xf32> to vector<4x4xf32>
    %cst = arith.constant dense<0.000000e+00> : vector<4x4xf32>
    %14 = tpu.matmul %11, %11, %cst {dimension_numbers = #tpu.dot_dimension_numbers<[1], [1], [0], [0], [0, 0, 1, 0], [], []>, precision = #tpu.contract_precision<fp32>} : vector<4x256xf32>, vector<4x256xf32>, vector<4x4xf32> -> vector<4x4xf32>
    %15 = arith.addf %13, %14 : vector<4x4xf32>
    %c0_10 = arith.constant 0 : index
    %c0_11 = arith.constant 0 : index
    %c0_12 = arith.constant 0 : index
    %c0_13 = arith.constant 0 : index
    %16 = vector.load %arg4[%c0_10, %c0_11, %c0_12, %c0_13] : memref<1x1x4x4xf32, #tpu.memory_space<vmem>>, vector<1x1x4x4xf32>
    %17 = vector.shape_cast %16 : vector<1x1x4x4xf32> to vector<4x4xf32>
    %18 = vector.shape_cast %15 : vector<4x4xf32> to vector<1x1x4x4xf32>
    tpu.vector_store %arg4[%c0_10, %c0_11, %c0_12, %c0_13], %18 {strides = array<i32>} : memref<1x1x4x4xf32, #tpu.memory_space<vmem>>, vector<1x1x4x4xf32>,
    %c0_i32_14 = arith.constant 0 : i32
    %19 = arith.cmpi eq, %arg2, %c0_i32_14 : i32
    %20 = arith.extui %19 : i1 to i32
    %c0_i32_15 = arith.constant 0 : i32
    %21 = arith.cmpi ne, %20, %c0_i32_15 : i32
    scf.if %21 {
      %c0_16 = arith.constant 0 : index
      %c0_17 = arith.constant 0 : index
      %c0_18 = arith.constant 0 : index
      %c0_19 = arith.constant 0 : index
      %22 = vector.load %arg4[%c0_16, %c0_17, %c0_18, %c0_19] : memref<1x1x4x4xf32, #tpu.memory_space<vmem>>, vector<1x1x4x4xf32>
      %23 = vector.shape_cast %22 : vector<1x1x4x4xf32> to vector<4x4xf32>
      %cst_20 = arith.constant 3.906250e-03 : f32
      %24 = vector.broadcast %cst_20 : f32 to vector<4x4xf32>
      %25 = arith.mulf %23, %24 : vector<4x4xf32>
      %c0_21 = arith.constant 0 : index
      %c0_22 = arith.constant 0 : index
      %c0_23 = arith.constant 0 : index
      %c0_24 = arith.constant 0 : index
      %26 = vector.load %arg4[%c0_21, %c0_22, %c0_23, %c0_24] : memref<1x1x4x4xf32, #tpu.memory_space<vmem>>, vector<1x1x4x4xf32>
      %27 = vector.shape_cast %26 : vector<1x1x4x4xf32> to vector<4x4xf32>
      %28 = vector.shape_cast %25 : vector<4x4xf32> to vector<1x1x4x4xf32>
      tpu.vector_store %arg4[%c0_21, %c0_22, %c0_23, %c0_24], %28 {strides = array<i32>} : memref<1x1x4x4xf32, #tpu.memory_space<vmem>>, vector<1x1x4x4xf32>,
    } else {
    }
    return
  }
  func.func @transform_0(%arg0: i32, %arg1: i32, %arg2: i32) -> (i32, i32, i32) {
    %c1_i32 = arith.constant 1 : i32
    %0 = arith.muli %arg0, %c1_i32 : i32
    %1 = arith.addi %0, %arg2 : i32
    %c0_i32 = arith.constant 0 : i32
    %2 = arith.minsi %1, %c0_i32 : i32
    %c0_i32_0 = arith.constant 0 : i32
    %c0_i32_1 = arith.constant 0 : i32
    return %arg1, %c0_i32_0, %2 : i32, i32, i32
  }
  func.func @transform_1(%arg0: i32, %arg1: i32, %arg2: i32) -> (i32, i32, i32, i32) {
    %c0_i32 = arith.constant 0 : i32
    %c0_i32_0 = arith.constant 0 : i32
    %c0_i32_1 = arith.constant 0 : i32
    return %arg1, %arg0, %c0_i32, %c0_i32_0 : i32, i32, i32, i32
  }
}

</mosaic_0001>

<llo_original>
// kernel: tpu_custom_call.1
$region0: #{tpu_custom_call.1}
  #allocation0 [shape = 'u32[]', space=smem, size = 0x4, offset = 0x4, fixed_abs, tag = 'smem constant byte address 0x4 - core index']
  #allocation1 [shape = 'u32[144,128]{1,0:T(1,128)}', space=vmem, size = 0x12000, scoped, tag = 'internal scratch']
  %s0 = inlined_call_operand.hbm [shape: f32[2,4,256], index: 0, kind: input, shape index: {}]
  %s1 = inlined_call_operand.hbm [shape: f32[2,1,4,4], index: 1, kind: output, shape index: {}]
  %s2 = sld [smem:[#allocation0]]
  $region53: #{tpu_custom_call.1} parent=0
    _
  %s4 = ssub.s32 1, %s2
  %s5 = scalar_select 0, %s4, %s2
  $region1: #{tpu_custom_call.1} parent=0
    #allocation2 [shape = 'u8[8192]{0}', space=vmem, size = 0x2000, scoped, tag = 'input window, operand 0']
    #allocation3 [shape = 's32[2]{0}', space=sflag, size = 0x8, scoped, tag = 'scoped memory for tpu_custom_call.1']
    #allocation4 [shape = 's32[2]{0}', space=sflag, size = 0x8, scoped, tag = 'scoped memory for tpu_custom_call.1']
    #allocation5 [shape = 'u8[4096]{0}', space=vmem, size = 0x1000, scoped, tag = 'output window, operand 0']
    %6 = vsyncpa [#allocation3], 0
    %s7 = scalar_lea.sflag [#allocation3], 1
    %8 = vsyncpa %s7, 0
    %9 = vsyncpa [#allocation4], 0
    %s10 = scalar_lea.sflag [#allocation4], 1
    %11 = vsyncpa %s10, 0
    loop: start=0, step=1, limit=4
    $region2: #{tpu_custom_call.1} parent=1 // loop_pre_header
      _
    $region3: #{tpu_custom_call.1} parent=1 // loop_header
      %s13 = sphi 0, %s17
      %p14 = scmp.ge.s32.totalorder %s13, 4
      %s20 = sphi 0, %s39
      %s21 = sphi 0, %s35
      %s22 = sphi 0, %s31
      %s23 = sphi 0, %s20
      %s24 = sphi 0, %s21
      %s25 = sphi 0, %s22
      %s26 = sphi 0, %s23
      %s27 = sphi 0, %s24
      %s28 = sphi 0, %s25
      %s50 = sphi 0, %s52
      %s53 = sphi 0, %s50
      %s54 = sphi 0, %s53
      %s70 = sphi 0, %s54
      %s78 = sphi 0, %s80
      %s81 = sphi 0, %s78
      %s82 = sphi 0, %s81
      %s98 = sphi 0, %s82
    $region4: #{tpu_custom_call.1} parent=1 // loop_header_branch
      %16 = sbr.rel (%p14) target = $region8
    $region5: #{tpu_custom_call.1} parent=1 // loop_body
      %s18 = ssub.s32 %s13, 1
      %s19 = ssub.s32 %s13, 2
      %s29 = sadd.s32 1, %s22
      %p30 = scmp.ge.s32.totalorder %s29, 1
      %s31 = scalar_select %p30, 0, %s29
      %s32 = sadd.s32 1, %s21
      %s33 = scalar_select %p30, %s32, %s21
      %p34 = scmp.ge.s32.totalorder %s33, 2
      %s35 = scalar_select %p34, 0, %s33
      %s36 = sadd.s32 1, %s20
      %s37 = scalar_select %p34, %s36, %s20
      %p38 = scmp.ge.s32.totalorder %s37, 1
      %s39 = scalar_select %p38, 0, %s37
      %s40 = sadd.s32 %s20, %s22
      %p41 = scmp.lt.s32.totalorder %s40, 0
      %s42 = scalar_select %p41, %s40, 0
      %s43 = sadd.s32 %s39, %s31
      %p44 = scmp.lt.s32.totalorder %s43, 0
      %s45 = scalar_select %p44, %s43, 0
      %s46 = ssub.s32 %s21, %s35
      %s47 = ssub.s32 %s42, %s45
      %s48 = sor.u32 %s46, %s47
      %p49 = scmp.eq.s32.totalorder %s48, 0
      %s51 = sadd.s32 %s50, 1
      %s52 = scalar_select %p49, %s50, %s51
      %p55 = pneg %p49
      %p56 = scmp.eq.s32.totalorder %s13, 1
      %p57 = por %p55, %p56
      %p58 = scmp.ne.s32.totalorder %s50, %s53
      %p59 = scmp.eq.s32.totalorder %s13, 0
      %p60 = por %p58, %p59
      %p61 = scmp.ne.s32.totalorder %s50, %s53
      %p62 = scmp.eq.s32.totalorder %s18, 1
      %p63 = por %p61, %p62
      %p64 = scmp.ne.s32.totalorder %s53, %s54
      %p65 = scmp.eq.s32.totalorder %s18, 0
      %p66 = por %p64, %p65
      %p67 = scmp.ne.s32.totalorder %s53, %s54
      %p68 = scmp.eq.s32.totalorder %s19, 1
      %p69 = por %p67, %p68
      %p71 = scmp.ne.s32.totalorder %s54, %s70
      %p72 = scmp.eq.s32.totalorder %s19, 0
      %p73 = por %p71, %p72
      %s74 = ssub.s32 %s21, %s35
      %s75 = ssub.s32 %s20, %s39
      %s76 = sor.u32 %s74, %s75
      %p77 = scmp.eq.s32.totalorder %s76, 0
      %s79 = sadd.s32 %s78, 1
      %s80 = scalar_select %p77, %s78, %s79
      %p83 = pneg %p77
      %p84 = scmp.eq.s32.totalorder %s13, 1
      %p85 = por %p83, %p84
      %p86 = scmp.ne.s32.totalorder %s78, %s81
      %p87 = scmp.eq.s32.totalorder %s13, 0
      %p88 = por %p86, %p87
      %p89 = scmp.ne.s32.totalorder %s78, %s81
      %p90 = scmp.eq.s32.totalorder %s18, 1
      %p91 = por %p89, %p90
      %p92 = scmp.ne.s32.totalorder %s81, %s82
      %p93 = scmp.eq.s32.totalorder %s18, 0
      %p94 = por %p92, %p93
      %p95 = scmp.ne.s32.totalorder %s81, %s82
      %p96 = scmp.eq.s32.totalorder %s19, 1
      %p97 = por %p95, %p96
      %p99 = scmp.ne.s32.totalorder %s82, %s98
      %p100 = scmp.eq.s32.totalorder %s19, 0
      %p101 = por %p99, %p100
      %p102 = scmp.le.s32.totalorder 1, %s13
      %p103 = scmp.lt.s32.totalorder %s13, 3
      %p104 = pnand %p102, %p103
      %p105 = pneg %p104
      // Predicated region
      $region9: #{tpu_custom_call.1} parent=5 // pred_check
        _
      $region10: #{tpu_custom_call.1} parent=5 // pred_check_branch
        %107 = sbr.rel (%p104) target = $region12
      $region11: #{tpu_custom_call.1} parent=5 // pred_region
        %s108 = ssub.s32 %s13, 1
      $region12: #{tpu_custom_call.1} parent=5 // pred_fallthru
        _
      %p109 = scmp.lt.s32.totalorder %s13, 2
      // Predicated region
      $region13: #{tpu_custom_call.1} parent=5 // pred_check
        %p110 = pneg %p109
      $region14: #{tpu_custom_call.1} parent=5 // pred_check_branch
        %112 = sbr.rel (%p110) target = $region16
      $region15: #{tpu_custom_call.1} parent=5 // pred_region
        // Predicated region
        $region17: #{tpu_custom_call.1} parent=15 // pred_check
          %p113 = pneg %p60
        $region18: #{tpu_custom_call.1} parent=15 // pred_check_branch
          %115 = sbr.rel (%p113) target = $region20
        $region19: #{tpu_custom_call.1} parent=15 // pred_region
          %s116 = sand.u32 %s50, 1
          %s117 = scalar_lea.sflag [#allocation3], %s116
          %s118 = sand.u32 %s50, 1
          %s119 = smul.addr %s118, 8
          %s120 = scalar_lea.vmem [#allocation2], %s119
          %s121 = sadd.s32 %s20, %s22
          %p122 = scmp.lt.s32.totalorder %s121, 0
          %s123 = scalar_select %p122, %s121, 0
          %s124 = smul.u32 2, %s123
          %s126 = ssub.s32 128, 128
          %127 = vsyncadd %s117, %s126
          %s128 = smul.addr %s21, 2
          %s129 = sadd.s32 %s124, %s128
          %s130 = smul.addr %s129, 64
          %s131 = scalar_lea.hbm %s0, %s130
          %s133 = sshll.u32 %s120, 4
          %s134 = int_to_ptr.vmem [resolvable:$true] %s133
          %136 = dma.hbm_to_vmem [thread:$0]  %s131, 128, %s134, %s117
        $region20: #{tpu_custom_call.1} parent=15 // pred_fallthru
          _
      $region16: #{tpu_custom_call.1} parent=5 // pred_fallthru
        _
      %p137 = scmp.le.s32.totalorder 1, %s13
      %p138 = scmp.lt.s32.totalorder %s13, 3
      %p139 = pnand %p137, %p138
      %p140 = pneg %p139
      // Predicated region
      $region21: #{tpu_custom_call.1} parent=5 // pred_check
        _
      $region22: #{tpu_custom_call.1} parent=5 // pred_check_branch
        %142 = sbr.rel (%p139) target = $region24
      $region23: #{tpu_custom_call.1} parent=5 // pred_region
        %s143 = ssub.s32 %s13, 1
        %s144 = sand.u32 %s53, 1
        %s145 = scalar_lea.sflag [#allocation3], %s144
        %s146 = sand.u32 %s53, 1
        %s147 = smul.addr %s146, 8
        %s148 = scalar_lea.vmem [#allocation2], %s147
        // Predicated region
        $region25: #{tpu_custom_call.1} parent=23 // pred_check
          %p149 = pneg %p66
        $region26: #{tpu_custom_call.1} parent=23 // pred_check_branch
          %151 = sbr.rel (%p149) target = $region28
        $region27: #{tpu_custom_call.1} parent=23 // pred_region
          %152 = dma.done %s145, 128
        $region28: #{tpu_custom_call.1} parent=23 // pred_fallthru
          _
        %s153 = sand.u32 %s53, 1
        %s154 = scalar_lea.sflag [#allocation3], %s153
        %s155 = sand.u32 %s53, 1
        %s156 = smul.addr %s155, 8
        %s157 = scalar_lea.vmem [#allocation2], %s156
        %p158 = pneg %p66
        %p159 = pneg %p63
        %p160 = pneg %p94
        %p161 = pneg %p91
        %s162 = sand.u32 %s81, 1
        %s163 = scalar_lea.sflag [#allocation4], %s162
        %s164 = sand.u32 %s81, 1
        %s165 = smul.addr %s164, 4
        %s166 = scalar_lea.vmem [#allocation5], %s165
        %s167 = sadd.s32 %s23, %s25
        %p168 = scmp.lt.s32.totalorder %s167, 0
        %s169 = scalar_select %p168, %s167, 0
        %s170 = smul.u32 2, %s169
        %s171 = sadd.s32 %s23, %s25
        %s172 = smul.u32 %s171, 256
        %s173 = ssub.s32 256, %s172
        %p174 = scmp.eq.s32.totalorder %s25, 0
        // Predicated region
        $region29: #{tpu_custom_call.1} parent=23 // pred_check
          %p175 = pneg %p174
        $region30: #{tpu_custom_call.1} parent=23 // pred_check_branch
          %177 = sbr.rel (%p175) target = $region32
        $region31: #{tpu_custom_call.1} parent=23 // pred_region
          %vm178 = vcmask 27648
          %179 = vst.msk [vmem:[%s166] sm:$0xf] %vm178, 0.0
        $region32: #{tpu_custom_call.1} parent=23 // pred_fallthru
          _
        %p180 = scmp.lt.s32.totalorder %s173, 256
        // Predicated region
        $region33: #{tpu_custom_call.1} parent=23 // pred_check
          %p181 = pneg %p180
        $region34: #{tpu_custom_call.1} parent=23 // pred_check_branch
          %183 = sbr.rel (%p181) target = $region36
        $region35: #{tpu_custom_call.1} parent=23 // pred_region
          %v184 = vlaneseq
          %v185 = vand.u32 %v184, 127
          %v186 = vadd.s32 %v185, 128
          %v187 = vstv %s173
          %vm188 = vcmp.lt.s32.totalorder %v185, %v187
          %vm189 = vcmp.lt.s32.totalorder %v186, %v187
          %v190 = vld [vmem:[%s148] sm:$0xff]
          %v192 = vcombine.high %v190, %v190
          %v194 = vsel %vm188, %v190, 0.0
          %v195 = vsel %vm189, %v192, 0.0
          %v198 = vcombine.low %v194, %v195
          %200 = vst [vmem:[%s148] sm:$0xff] %v198
        $region36: #{tpu_custom_call.1} parent=23 // pred_fallthru
          _
        %v201 = vld [vmem:[%s148] sm:$0xff]
        %v202 = vld [vmem:[%s166] sm:$0xf]
        %v204 = vcombine.high %v201, %v201
        %v206 = vand.u32 %v204, 4294901760
        %207 = vmatprep.subr.mxu0 %v206
        %v208 = vand.u32 %v201, 4294901760
        %209 = vmatpush1.xpose.msra.mxu0 %v208
        %210 = vmatprep.subr.mxu0 0.0
        %211 = vmatpush1.xpose.msra.mxu0 0.0
        %212 = vmatprep.subr.mxu0 0.0
        %213 = vmatpush1.xpose.msra.mxu0 0.0
        %214 = vmatprep.subr.mxu0 0.0
        %215 = vmatpush1.xpose.msra.mxu0 0.0
        %216 = vmatprep.subr.mxu0 0.0
        %217 = vmatpush1.xpose.msra.mxu0 0.0
        %218 = vmatprep.subr.mxu0 0.0
        %219 = vmatpush1.xpose.msra.mxu0 0.0
        %220 = vmatprep.subr.mxu0 0.0
        %221 = vmatpush1.xpose.msra.mxu0 0.0
        %222 = vmatprep.subr.mxu0 0.0
        %223 = vmatpush1.xpose.msra.mxu0 0.0
        %224 = vmatprep.subr.mxu0 0.0
        %225 = vmatpush1.xpose.msra.mxu0 0.0
        %226 = vmatprep.subr.mxu0 0.0
        %227 = vmatpush1.xpose.msra.mxu0 0.0
        %228 = vmatprep.subr.mxu0 0.0
        %229 = vmatpush1.xpose.msra.mxu0 0.0
        %230 = vmatprep.subr.mxu0 0.0
        %231 = vmatpush1.xpose.msra.mxu0 0.0
        %232 = vmatprep.subr.mxu0 0.0
        %233 = vmatpush1.xpose.msra.mxu0 0.0
        %234 = vmatprep.subr.mxu0 0.0
        %235 = vmatpush1.xpose.msra.mxu0 0.0
        %236 = vmatprep.subr.mxu0 0.0
        %237 = vmatpush1.xpose.msra.mxu0 0.0
        %238 = vmatprep.subr.mxu0 0.0
        %239 = vmatpush1.xpose.msra.mxu0 0.0
        %240 = vmatprep.subr.mxu0 0.0
        %241 = vmatpush1.xpose.msra.mxu0 0.0
        %242 = vmatprep.subr.mxu0 0.0
        %243 = vmatpush1.xpose.msra.mxu0 0.0
        %244 = vmatprep.subr.mxu0 0.0
        %245 = vmatpush1.xpose.msra.mxu0 0.0
        %246 = vmatprep.subr.mxu0 0.0
        %247 = vmatpush1.xpose.msra.mxu0 0.0
        %248 = vmatprep.subr.mxu0 0.0
        %249 = vmatpush1.xpose.msra.mxu0 0.0
        %250 = vmatprep.subr.mxu0 0.0
        %251 = vmatpush1.xpose.msra.mxu0 0.0
        %252 = vmatprep.subr.mxu0 0.0
        %253 = vmatpush1.xpose.msra.mxu0 0.0
        %254 = vmatprep.subr.mxu0 0.0
        %255 = vmatpush1.xpose.msra.mxu0 0.0
        %256 = vmatprep.subr.mxu0 0.0
        %257 = vmatpush1.xpose.msra.mxu0 0.0
        %258 = vmatprep.subr.mxu0 0.0
        %259 = vmatpush1.xpose.msra.mxu0 0.0
        %260 = vmatprep.subr.mxu0 0.0
        %261 = vmatpush1.xpose.msra.mxu0 0.0
        %262 = vmatprep.subr.mxu0 0.0
        %263 = vmatpush1.xpose.msra.mxu0 0.0
        %264 = vmatprep.subr.mxu0 0.0
        %265 = vmatpush1.xpose.msra.mxu0 0.0
        %266 = vmatprep.subr.mxu0 0.0
        %267 = vmatpush1.xpose.msra.mxu0 0.0
        %268 = vmatprep.subr.mxu0 0.0
        %269 = vmatpush1.xpose.msra.mxu0 0.0
        %270 = vmatprep.subr.mxu0 0.0
        %271 = vmatpush1.xpose.msra.mxu0 0.0
        %v272 = vand.u32 %v204, 4294901760
        %v273 = vsub.f32 %v204, %v272
        %v274 = vand.u32 %v273, 4294901760
        %v275 = vsub.f32 %v273, %v274
        %v276 = vand.u32 %v275, 4294901760
        %277 = vmatprep.mubr.f32.mxu0 %v276
        %v278 = vand.u32 %v201, 4294901760
        %v279 = vsub.f32 %v201, %v278
        %v280 = vand.u32 %v279, 4294901760
        %v281 = vsub.f32 %v279, %v280
        %v282 = vand.u32 %v281, 4294901760
        %283 = vmatmul.mubr.f32.gmra.mrb[0].mxu0 %v282
        %v284 = vpop.f32.mrb[0].mxu0
        %v285 = vadd.f32 0.0, %v284
        %v286 = vpop.f32.mrb[0].mxu0
        %287 = vdwg.mxu0
        %v288 = vand.u32 %v204, 4294901760
        %v289 = vsub.f32 %v204, %v288
        %v290 = vand.u32 %v289, 4294901760
        %v291 = vsub.f32 %v289, %v290
        %v292 = vand.u32 %v291, 4294901760
        %293 = vmatprep.subr.mxu0 %v292
        %v294 = vand.u32 %v201, 4294901760
        %v295 = vsub.f32 %v201, %v294
        %v296 = vand.u32 %v295, 4294901760
        %v297 = vsub.f32 %v295, %v296
        %v298 = vand.u32 %v297, 4294901760
        %299 = vmatpush1.xpose.msra.mxu0 %v298
        %300 = vmatprep.subr.mxu0 0.0
        %301 = vmatpush1.xpose.msra.mxu0 0.0
        %302 = vmatprep.subr.mxu0 0.0
        %303 = vmatpush1.xpose.msra.mxu0 0.0
        %304 = vmatprep.subr.mxu0 0.0
        %305 = vmatpush1.xpose.msra.mxu0 0.0
        %306 = vmatprep.subr.mxu0 0.0
        %307 = vmatpush1.xpose.msra.mxu0 0.0
        %308 = vmatprep.subr.mxu0 0.0
        %309 = vmatpush1.xpose.msra.mxu0 0.0
        %310 = vmatprep.subr.mxu0 0.0
        %311 = vmatpush1.xpose.msra.mxu0 0.0
        %312 = vmatprep.subr.mxu0 0.0
        %313 = vmatpush1.xpose.msra.mxu0 0.0
        %314 = vmatprep.subr.mxu0 0.0
        %315 = vmatpush1.xpose.msra.mxu0 0.0
        %316 = vmatprep.subr.mxu0 0.0
        %317 = vmatpush1.xpose.msra.mxu0 0.0
        %318 = vmatprep.subr.mxu0 0.0
        %319 = vmatpush1.xpose.msra.mxu0 0.0
        %320 = vmatprep.subr.mxu0 0.0
        %321 = vmatpush1.xpose.msra.mxu0 0.0
        %322 = vmatprep.subr.mxu0 0.0
        %323 = vmatpush1.xpose.msra.mxu0 0.0
        %324 = vmatprep.subr.mxu0 0.0
        %325 = vmatpush1.xpose.msra.mxu0 0.0
        %326 = vmatprep.subr.mxu0 0.0
        %327 = vmatpush1.xpose.msra.mxu0 0.0
        %328 = vmatprep.subr.mxu0 0.0
        %329 = vmatpush1.xpose.msra.mxu0 0.0
        %330 = vmatprep.subr.mxu0 0.0
        %331 = vmatpush1.xpose.msra.mxu0 0.0
        %332 = vmatprep.subr.mxu0 0.0
        %333 = vmatpush1.xpose.msra.mxu0 0.0
        %334 = vmatprep.subr.mxu0 0.0
        %335 = vmatpush1.xpose.msra.mxu0 0.0
        %336 = vmatprep.subr.mxu0 0.0
        %337 = vmatpush1.xpose.msra.mxu0 0.0
        %338 = vmatprep.subr.mxu0 0.0
        %339 = vmatpush1.xpose.msra.mxu0 0.0
        %340 = vmatprep.subr.mxu0 0.0
        %341 = vmatpush1.xpose.msra.mxu0 0.0
        %342 = vmatprep.subr.mxu0 0.0
        %343 = vmatpush1.xpose.msra.mxu0 0.0
        %344 = vmatprep.subr.mxu0 0.0
        %345 = vmatpush1.xpose.msra.mxu0 0.0
        %346 = vmatprep.subr.mxu0 0.0
        %347 = vmatpush1.xpose.msra.mxu0 0.0
        %348 = vmatprep.subr.mxu0 0.0
        %349 = vmatpush1.xpose.msra.mxu0 0.0
        %350 = vmatprep.subr.mxu0 0.0
        %351 = vmatpush1.xpose.msra.mxu0 0.0
        %352 = vmatprep.subr.mxu0 0.0
        %353 = vmatpush1.xpose.msra.mxu0 0.0
        %354 = vmatprep.subr.mxu0 0.0
        %355 = vmatpush1.xpose.msra.mxu0 0.0
        %356 = vmatprep.subr.mxu0 0.0
        %357 = vmatpush1.xpose.msra.mxu0 0.0
        %358 = vmatprep.subr.mxu0 0.0
        %359 = vmatpush1.xpose.msra.mxu0 0.0
        %360 = vmatprep.subr.mxu0 0.0
        %361 = vmatpush1.xpose.msra.mxu0 0.0
        %v362 = vand.u32 %v204, 4294901760
        %363 = vmatprep.mubr.f32.mxu0 %v362
        %v364 = vand.u32 %v201, 4294901760
        %365 = vmatmul.mubr.f32.gmra.mrb[0].mxu0 %v364
        %v366 = vpop.f32.mrb[0].mxu0
        %v367 = vadd.f32 %v285, %v366
        %v368 = vpop.f32.mrb[0].mxu0
        %369 = vdwg.mxu0
        %v370 = vand.u32 %v204, 4294901760
        %v371 = vsub.f32 %v204, %v370
        %372 = vmatprep.subr.mxu0 %v371
        %v373 = vand.u32 %v201, 4294901760
        %v374 = vsub.f32 %v201, %v373
        %375 = vmatpush1.xpose.msra.mxu0 %v374
        %376 = vmatprep.subr.mxu0 0.0
        %377 = vmatpush1.xpose.msra.mxu0 0.0
        %378 = vmatprep.subr.mxu0 0.0
        %379 = vmatpush1.xpose.msra.mxu0 0.0
        %380 = vmatprep.subr.mxu0 0.0
        %381 = vmatpush1.xpose.msra.mxu0 0.0
        %382 = vmatprep.subr.mxu0 0.0
        %383 = vmatpush1.xpose.msra.mxu0 0.0
        %384 = vmatprep.subr.mxu0 0.0
        %385 = vmatpush1.xpose.msra.mxu0 0.0
        %386 = vmatprep.subr.mxu0 0.0
        %387 = vmatpush1.xpose.msra.mxu0 0.0
        %388 = vmatprep.subr.mxu0 0.0
        %389 = vmatpush1.xpose.msra.mxu0 0.0
        %390 = vmatprep.subr.mxu0 0.0
        %391 = vmatpush1.xpose.msra.mxu0 0.0
        %392 = vmatprep.subr.mxu0 0.0
        %393 = vmatpush1.xpose.msra.mxu0 0.0
        %394 = vmatprep.subr.mxu0 0.0
        %395 = vmatpush1.xpose.msra.mxu0 0.0
        %396 = vmatprep.subr.mxu0 0.0
        %397 = vmatpush1.xpose.msra.mxu0 0.0
        %398 = vmatprep.subr.mxu0 0.0
        %399 = vmatpush1.xpose.msra.mxu0 0.0
        %400 = vmatprep.subr.mxu0 0.0
        %401 = vmatpush1.xpose.msra.mxu0 0.0
        %402 = vmatprep.subr.mxu0 0.0
        %403 = vmatpush1.xpose.msra.mxu0 0.0
        %404 = vmatprep.subr.mxu0 0.0
        %405 = vmatpush1.xpose.msra.mxu0 0.0
        %406 = vmatprep.subr.mxu0 0.0
        %407 = vmatpush1.xpose.msra.mxu0 0.0
        %408 = vmatprep.subr.mxu0 0.0
        %409 = vmatpush1.xpose.msra.mxu0 0.0
        %410 = vmatprep.subr.mxu0 0.0
        %411 = vmatpush1.xpose.msra.mxu0 0.0
        %412 = vmatprep.subr.mxu0 0.0
        %413 = vmatpush1.xpose.msra.mxu0 0.0
        %414 = vmatprep.subr.mxu0 0.0
        %415 = vmatpush1.xpose.msra.mxu0 0.0
        %416 = vmatprep.subr.mxu0 0.0
        %417 = vmatpush1.xpose.msra.mxu0 0.0
        %418 = vmatprep.subr.mxu0 0.0
        %419 = vmatpush1.xpose.msra.mxu0 0.0
        %420 = vmatprep.subr.mxu0 0.0
        %421 = vmatpush1.xpose.msra.mxu0 0.0
        %422 = vmatprep.subr.mxu0 0.0
        %423 = vmatpush1.xpose.msra.mxu0 0.0
        %424 = vmatprep.subr.mxu0 0.0
        %425 = vmatpush1.xpose.msra.mxu0 0.0
        %426 = vmatprep.subr.mxu0 0.0
        %427 = vmatpush1.xpose.msra.mxu0 0.0
        %428 = vmatprep.subr.mxu0 0.0
        %429 = vmatpush1.xpose.msra.mxu0 0.0
        %430 = vmatprep.subr.mxu0 0.0
        %431 = vmatpush1.xpose.msra.mxu0 0.0
        %432 = vmatprep.subr.mxu0 0.0
        %433 = vmatpush1.xpose.msra.mxu0 0.0
        %434 = vmatprep.subr.mxu0 0.0
        %435 = vmatpush1.xpose.msra.mxu0 0.0
        %436 = vmatprep.subr.mxu0 0.0
        %437 = vmatpush1.xpose.msra.mxu0 0.0
        %v438 = vand.u32 %v204, 4294901760
        %v439 = vsub.f32 %v204, %v438
        %440 = vmatprep.mubr.f32.mxu0 %v439
        %v441 = vand.u32 %v201, 4294901760
        %v442 = vsub.f32 %v201, %v441
        %443 = vmatmul.mubr.f32.gmra.mrb[0].mxu0 %v442
        %v444 = vpop.f32.mrb[0].mxu0
        %v445 = vadd.f32 %v367, %v444
        %v446 = vpop.f32.mrb[0].mxu0
        %447 = vdwg.mxu0
        %v448 = vand.u32 %v204, 4294901760
        %449 = vmatprep.subr.mxu0 %v448
        %v450 = vand.u32 %v201, 4294901760
        %451 = vmatpush1.xpose.msra.mxu0 %v450
        %452 = vmatprep.subr.mxu0 0.0
        %453 = vmatpush1.xpose.msra.mxu0 0.0
        %454 = vmatprep.subr.mxu0 0.0
        %455 = vmatpush1.xpose.msra.mxu0 0.0
        %456 = vmatprep.subr.mxu0 0.0
        %457 = vmatpush1.xpose.msra.mxu0 0.0
        %458 = vmatprep.subr.mxu0 0.0
        %459 = vmatpush1.xpose.msra.mxu0 0.0
        %460 = vmatprep.subr.mxu0 0.0
        %461 = vmatpush1.xpose.msra.mxu0 0.0
        %462 = vmatprep.subr.mxu0 0.0
        %463 = vmatpush1.xpose.msra.mxu0 0.0
        %464 = vmatprep.subr.mxu0 0.0
        %465 = vmatpush1.xpose.msra.mxu0 0.0
        %466 = vmatprep.subr.mxu0 0.0
        %467 = vmatpush1.xpose.msra.mxu0 0.0
        %468 = vmatprep.subr.mxu0 0.0
        %469 = vmatpush1.xpose.msra.mxu0 0.0
        %470 = vmatprep.subr.mxu0 0.0
        %471 = vmatpush1.xpose.msra.mxu0 0.0
        %472 = vmatprep.subr.mxu0 0.0
        %473 = vmatpush1.xpose.msra.mxu0 0.0
        %474 = vmatprep.subr.mxu0 0.0
        %475 = vmatpush1.xpose.msra.mxu0 0.0
        %476 = vmatprep.subr.mxu0 0.0
        %477 = vmatpush1.xpose.msra.mxu0 0.0
        %478 = vmatprep.subr.mxu0 0.0
        %479 = vmatpush1.xpose.msra.mxu0 0.0
        %480 = vmatprep.subr.mxu0 0.0
        %481 = vmatpush1.xpose.msra.mxu0 0.0
        %482 = vmatprep.subr.mxu0 0.0
        %483 = vmatpush1.xpose.msra.mxu0 0.0
        %484 = vmatprep.subr.mxu0 0.0
        %485 = vmatpush1.xpose.msra.mxu0 0.0
        %486 = vmatprep.subr.mxu0 0.0
        %487 = vmatpush1.xpose.msra.mxu0 0.0
        %488 = vmatprep.subr.mxu0 0.0
        %489 = vmatpush1.xpose.msra.mxu0 0.0
        %490 = vmatprep.subr.mxu0 0.0
        %491 = vmatpush1.xpose.msra.mxu0 0.0
        %492 = vmatprep.subr.mxu0 0.0
        %493 = vmatpush1.xpose.msra.mxu0 0.0
        %494 = vmatprep.subr.mxu0 0.0
        %495 = vmatpush1.xpose.msra.mxu0 0.0
        %496 = vmatprep.subr.mxu0 0.0
        %497 = vmatpush1.xpose.msra.mxu0 0.0
        %498 = vmatprep.subr.mxu0 0.0
        %499 = vmatpush1.xpose.msra.mxu0 0.0
        %500 = vmatprep.subr.mxu0 0.0
        %501 = vmatpush1.xpose.msra.mxu0 0.0
        %502 = vmatprep.subr.mxu0 0.0
        %503 = vmatpush1.xpose.msra.mxu0 0.0
        %504 = vmatprep.subr.mxu0 0.0
        %505 = vmatpush1.xpose.msra.mxu0 0.0
        %506 = vmatprep.subr.mxu0 0.0
        %507 = vmatpush1.xpose.msra.mxu0 0.0
        %508 = vmatprep.subr.mxu0 0.0
        %509 = vmatpush1.xpose.msra.mxu0 0.0
        %510 = vmatprep.subr.mxu0 0.0
        %511 = vmatpush1.xpose.msra.mxu0 0.0
        %512 = vmatprep.subr.mxu0 0.0
        %513 = vmatpush1.xpose.msra.mxu0 0.0
        %v514 = vand.u32 %v204, 4294901760
        %v515 = vsub.f32 %v204, %v514
        %v516 = vand.u32 %v515, 4294901760
        %517 = vmatprep.mubr.f32.mxu0 %v516
        %v518 = vand.u32 %v201, 4294901760
        %v519 = vsub.f32 %v201, %v518
        %v520 = vand.u32 %v519, 4294901760
        %521 = vmatmul.mubr.f32.gmra.mrb[0].mxu0 %v520
        %v522 = vpop.f32.mrb[0].mxu0
        %v523 = vadd.f32 %v445, %v522
        %v524 = vpop.f32.mrb[0].mxu0
        %525 = vdwg.mxu0
        %v526 = vand.u32 %v204, 4294901760
        %v527 = vsub.f32 %v204, %v526
        %v528 = vand.u32 %v527, 4294901760
        %529 = vmatprep.subr.mxu0 %v528
        %v530 = vand.u32 %v201, 4294901760
        %v531 = vsub.f32 %v201, %v530
        %v532 = vand.u32 %v531, 4294901760
        %533 = vmatpush1.xpose.msra.mxu0 %v532
        %534 = vmatprep.subr.mxu0 0.0
        %535 = vmatpush1.xpose.msra.mxu0 0.0
        %536 = vmatprep.subr.mxu0 0.0
        %537 = vmatpush1.xpose.msra.mxu0 0.0
        %538 = vmatprep.subr.mxu0 0.0
        %539 = vmatpush1.xpose.msra.mxu0 0.0
        %540 = vmatprep.subr.mxu0 0.0
        %541 = vmatpush1.xpose.msra.mxu0 0.0
        %542 = vmatprep.subr.mxu0 0.0
        %543 = vmatpush1.xpose.msra.mxu0 0.0
        %544 = vmatprep.subr.mxu0 0.0
        %545 = vmatpush1.xpose.msra.mxu0 0.0
        %546 = vmatprep.subr.mxu0 0.0
        %547 = vmatpush1.xpose.msra.mxu0 0.0
        %548 = vmatprep.subr.mxu0 0.0
        %549 = vmatpush1.xpose.msra.mxu0 0.0
        %550 = vmatprep.subr.mxu0 0.0
        %551 = vmatpush1.xpose.msra.mxu0 0.0
        %552 = vmatprep.subr.mxu0 0.0
        %553 = vmatpush1.xpose.msra.mxu0 0.0
        %554 = vmatprep.subr.mxu0 0.0
        %555 = vmatpush1.xpose.msra.mxu0 0.0
        %556 = vmatprep.subr.mxu0 0.0
        %557 = vmatpush1.xpose.msra.mxu0 0.0
        %558 = vmatprep.subr.mxu0 0.0
        %559 = vmatpush1.xpose.msra.mxu0 0.0
        %560 = vmatprep.subr.mxu0 0.0
        %561 = vmatpush1.xpose.msra.mxu0 0.0
        %562 = vmatprep.subr.mxu0 0.0
        %563 = vmatpush1.xpose.msra.mxu0 0.0
        %564 = vmatprep.subr.mxu0 0.0
        %565 = vmatpush1.xpose.msra.mxu0 0.0
        %566 = vmatprep.subr.mxu0 0.0
        %567 = vmatpush1.xpose.msra.mxu0 0.0
        %568 = vmatprep.subr.mxu0 0.0
        %569 = vmatpush1.xpose.msra.mxu0 0.0
        %570 = vmatprep.subr.mxu0 0.0
        %571 = vmatpush1.xpose.msra.mxu0 0.0
        %572 = vmatprep.subr.mxu0 0.0
        %573 = vmatpush1.xpose.msra.mxu0 0.0
        %574 = vmatprep.subr.mxu0 0.0
        %575 = vmatpush1.xpose.msra.mxu0 0.0
        %576 = vmatprep.subr.mxu0 0.0
        %577 = vmatpush1.xpose.msra.mxu0 0.0
        %578 = vmatprep.subr.mxu0 0.0
        %579 = vmatpush1.xpose.msra.mxu0 0.0
        %580 = vmatprep.subr.mxu0 0.0
        %581 = vmatpush1.xpose.msra.mxu0 0.0
        %582 = vmatprep.subr.mxu0 0.0
        %583 = vmatpush1.xpose.msra.mxu0 0.0
        %584 = vmatprep.subr.mxu0 0.0
        %585 = vmatpush1.xpose.msra.mxu0 0.0
        %586 = vmatprep.subr.mxu0 0.0
        %587 = vmatpush1.xpose.msra.mxu0 0.0
        %588 = vmatprep.subr.mxu0 0.0
        %589 = vmatpush1.xpose.msra.mxu0 0.0
        %590 = vmatprep.subr.mxu0 0.0
        %591 = vmatpush1.xpose.msra.mxu0 0.0
        %592 = vmatprep.subr.mxu0 0.0
        %593 = vmatpush1.xpose.msra.mxu0 0.0
        %594 = vmatprep.subr.mxu0 0.0
        %595 = vmatpush1.xpose.msra.mxu0 0.0
        %v596 = vand.u32 %v204, 4294901760
        %597 = vmatprep.mubr.f32.mxu0 %v596
        %v598 = vand.u32 %v201, 4294901760
        %599 = vmatmul.mubr.f32.gmra.mrb[0].mxu0 %v598
        %v600 = vpop.f32.mrb[0].mxu0
        %v601 = vadd.f32 %v523, %v600
        %v602 = vpop.f32.mrb[0].mxu0
        %603 = vdwg.mxu0
        %v604 = vand.u32 %v204, 4294901760
        %605 = vmatprep.subr.mxu0 %v604
        %v606 = vand.u32 %v201, 4294901760
        %607 = vmatpush1.xpose.msra.mxu0 %v606
        %608 = vmatprep.subr.mxu0 0.0
        %609 = vmatpush1.xpose.msra.mxu0 0.0
        %610 = vmatprep.subr.mxu0 0.0
        %611 = vmatpush1.xpose.msra.mxu0 0.0
        %612 = vmatprep.subr.mxu0 0.0
        %613 = vmatpush1.xpose.msra.mxu0 0.0
        %614 = vmatprep.subr.mxu0 0.0
        %615 = vmatpush1.xpose.msra.mxu0 0.0
        %616 = vmatprep.subr.mxu0 0.0
        %617 = vmatpush1.xpose.msra.mxu0 0.0
        %618 = vmatprep.subr.mxu0 0.0
        %619 = vmatpush1.xpose.msra.mxu0 0.0
        %620 = vmatprep.subr.mxu0 0.0
        %621 = vmatpush1.xpose.msra.mxu0 0.0
        %622 = vmatprep.subr.mxu0 0.0
        %623 = vmatpush1.xpose.msra.mxu0 0.0
        %624 = vmatprep.subr.mxu0 0.0
        %625 = vmatpush1.xpose.msra.mxu0 0.0
        %626 = vmatprep.subr.mxu0 0.0
        %627 = vmatpush1.xpose.msra.mxu0 0.0
        %628 = vmatprep.subr.mxu0 0.0
        %629 = vmatpush1.xpose.msra.mxu0 0.0
        %630 = vmatprep.subr.mxu0 0.0
        %631 = vmatpush1.xpose.msra.mxu0 0.0
        %632 = vmatprep.subr.mxu0 0.0
        %633 = vmatpush1.xpose.msra.mxu0 0.0
        %634 = vmatprep.subr.mxu0 0.0
        %635 = vmatpush1.xpose.msra.mxu0 0.0
        %636 = vmatprep.subr.mxu0 0.0
        %637 = vmatpush1.xpose.msra.mxu0 0.0
        %638 = vmatprep.subr.mxu0 0.0
        %639 = vmatpush1.xpose.msra.mxu0 0.0
        %640 = vmatprep.subr.mxu0 0.0
        %641 = vmatpush1.xpose.msra.mxu0 0.0
        %642 = vmatprep.subr.mxu0 0.0
        %643 = vmatpush1.xpose.msra.mxu0 0.0
        %644 = vmatprep.subr.mxu0 0.0
        %645 = vmatpush1.xpose.msra.mxu0 0.0
        %646 = vmatprep.subr.mxu0 0.0
        %647 = vmatpush1.xpose.msra.mxu0 0.0
        %648 = vmatprep.subr.mxu0 0.0
        %649 = vmatpush1.xpose.msra.mxu0 0.0
        %650 = vmatprep.subr.mxu0 0.0
        %651 = vmatpush1.xpose.msra.mxu0 0.0
        %652 = vmatprep.subr.mxu0 0.0
        %653 = vmatpush1.xpose.msra.mxu0 0.0
        %654 = vmatprep.subr.mxu0 0.0
        %655 = vmatpush1.xpose.msra.mxu0 0.0
        %656 = vmatprep.subr.mxu0 0.0
        %657 = vmatpush1.xpose.msra.mxu0 0.0
        %658 = vmatprep.subr.mxu0 0.0
        %659 = vmatpush1.xpose.msra.mxu0 0.0
        %660 = vmatprep.subr.mxu0 0.0
        %661 = vmatpush1.xpose.msra.mxu0 0.0
        %662 = vmatprep.subr.mxu0 0.0
        %663 = vmatpush1.xpose.msra.mxu0 0.0
        %664 = vmatprep.subr.mxu0 0.0
        %665 = vmatpush1.xpose.msra.mxu0 0.0
        %666 = vmatprep.subr.mxu0 0.0
        %667 = vmatpush1.xpose.msra.mxu0 0.0
        %668 = vmatprep.subr.mxu0 0.0
        %669 = vmatpush1.xpose.msra.mxu0 0.0
        %v670 = vand.u32 %v204, 4294901760
        %671 = vmatprep.mubr.f32.mxu0 %v670
        %v672 = vand.u32 %v201, 4294901760
        %673 = vmatmul.mubr.f32.gmra.mrb[0].mxu0 %v672
        %v674 = vpop.f32.mrb[0].mxu0
        %v675 = vadd.f32 %v601, %v674
        %v676 = vpop.f32.mrb[0].mxu0
        %677 = vdwg.mxu0
        %v678 = vadd.f32 %v202, %v675
        %vm679 = vcmask 27648
        %680 = vst.msk [vmem:[%s166] sm:$0xf] %vm679, %v678
        // Predicated region
        $region37: #{tpu_custom_call.1} parent=23 // pred_check
          %p681 = pneg %p174
        $region38: #{tpu_custom_call.1} parent=23 // pred_check_branch
          %683 = sbr.rel (%p681) target = $region40
        $region39: #{tpu_custom_call.1} parent=23 // pred_region
          %v684 = vld [vmem:[%s166] sm:$0xf]
          %v685 = vmul.f32 %v684, 0.00390625
          %686 = vst.msk [vmem:[%s166] sm:$0xf] %vm679, %v685
        $region40: #{tpu_custom_call.1} parent=23 // pred_fallthru
          _
        %s687 = sand.u32 %s81, 1
        %s688 = scalar_lea.sflag [#allocation4], %s687
        %s689 = sand.u32 %s81, 1
        %s690 = smul.addr %s689, 4
        %s691 = scalar_lea.vmem [#allocation5], %s690
        // Predicated region
        $region41: #{tpu_custom_call.1} parent=23 // pred_check
          %p692 = pneg %p91
        $region42: #{tpu_custom_call.1} parent=23 // pred_check_branch
          %694 = sbr.rel (%p692) target = $region44
        $region43: #{tpu_custom_call.1} parent=23 // pred_region
          %s696 = ssub.s32 64, 64
          %697 = vsyncadd %s688, %s696
          %s698 = sadd.s32 %s23, %s24
          %s699 = smul.addr %s698, 64
          %s700 = scalar_lea.hbm %s1, %s699
          %s702 = sshll.u32 %s691, 4
          %s703 = int_to_ptr.vmem [resolvable:$true] %s702
          %705 = dma.vmem_to_hbm [thread:$0]  %s703, 64, %s700, %s688
        $region44: #{tpu_custom_call.1} parent=23 // pred_fallthru
          _
      $region24: #{tpu_custom_call.1} parent=5 // pred_fallthru
        _
      %p706 = scmp.le.s32.totalorder 2, %s13
      // Predicated region
      $region45: #{tpu_custom_call.1} parent=5 // pred_check
        %p707 = pneg %p706
      $region46: #{tpu_custom_call.1} parent=5 // pred_check_branch
        %709 = sbr.rel (%p707) target = $region48
      $region47: #{tpu_custom_call.1} parent=5 // pred_region
        %s710 = ssub.s32 %s13, 2
        // Predicated region
        $region49: #{tpu_custom_call.1} parent=47 // pred_check
          %p711 = pneg %p97
        $region50: #{tpu_custom_call.1} parent=47 // pred_check_branch
          %713 = sbr.rel (%p711) target = $region52
        $region51: #{tpu_custom_call.1} parent=47 // pred_region
          %s714 = sand.u32 %s82, 1
          %s715 = scalar_lea.sflag [#allocation4], %s714
          %s716 = sand.u32 %s82, 1
          %s717 = smul.addr %s716, 4
          %s718 = scalar_lea.vmem [#allocation5], %s717
          %719 = dma.done %s715, 64
        $region52: #{tpu_custom_call.1} parent=47 // pred_fallthru
          _
      $region48: #{tpu_custom_call.1} parent=5 // pred_fallthru
        _
    $region6: #{tpu_custom_call.1} parent=1 // loop_footer
      %s17 = sadd.s32 1, %s13
    $region7: #{tpu_custom_call.1} parent=1 // loop_footer_branch
      %12 = sbr.rel target = $region3
    $region8: #{tpu_custom_call.1} parent=1 // loop_exit
      _
    %720 = vsyncpa [#allocation3], 1
    %s721 = scalar_lea.sflag [#allocation3], 1
    %722 = vsyncpa %s721, 1
    %723 = vsyncpa [#allocation4], 1
    %s724 = scalar_lea.sflag [#allocation4], 1
    %725 = vsyncpa %s724, 1

</llo_original>
